<compile_context>
chip_gen: v5e
topology: v5e:2x2
jax: 0.10.0
libtpu: 0.0.40
codegen_flags: <defaults>
</compile_context>

<pallas_src>
import functools

import jax
import jax.numpy as jnp
from jax.experimental import pallas as pl
from jax.experimental.pallas import tpu as pltpu

BLOCK_SIZE = 32     # max sequence length in the torch module
N_EMBD = 64
NUM_HEADS = 4
HEAD_SIZE = N_EMBD // NUM_HEADS   # 16


def _mha_kernel(x_ref, wqkv_ref, wo_ref, bo_ref, o_ref, *, num_heads):
    # x_ref:    (B, T, C)
    # wqkv_ref: (C, 3*C)  packed as [q heads | k heads | v heads], each head hs wide
    # wo_ref:   (C, C)    == wp.T  (so y = out @ wo + b)
    # bo_ref:   (1, C)
    B, T, C = x_ref.shape
    hs = C // num_heads
    scale = C ** (-0.5)        # matches `* C ** (-0.5)` in the reference

    x2d = x_ref[...].reshape(B * T, C)

    # Fused QKV projection: one lane-dense (B*T, C) x (C, 3*C) matmul.
    qkv = jnp.dot(x2d, wqkv_ref[...], preferred_element_type=jnp.float32)  # (B*T, 3C)

    # Causal additive mask, built once (>=2D iota required on TPU); finite fill.
    row = jax.lax.broadcasted_iota(jnp.int32, (T, T), 0)
    col = jax.lax.broadcasted_iota(jnp.int32, (T, T), 1)
    neg_mask = jnp.where(row >= col, 0.0, -1e30).astype(jnp.float32)       # (T, T)

    wo = wo_ref[...]                                                       # (C, C)
    acc = jnp.zeros((B * T, C), jnp.float32)

    for h in range(num_heads):     # static unroll, H = 4
        q = (qkv[:, 0 * C + h * hs: 0 * C + (h + 1) * hs] * scale).reshape(B, T, hs)
        k = qkv[:, 1 * C + h * hs: 1 * C + (h + 1) * hs].reshape(B, T, hs)
        v = qkv[:, 2 * C + h * hs: 2 * C + (h + 1) * hs].reshape(B, T, hs)

        # Scores: contract the head dim directly (no explicit transpose).
        s = jnp.einsum('bqd,bkd->bqk', q, k,
                       preferred_element_type=jnp.float32)                 # (B, T, T)
        s = s + neg_mask[None, :, :]
        p = jax.nn.softmax(s, axis=-1)
        # dropout(p=0.0) is the identity -> skipped

        o_h = jnp.einsum('bqk,bkd->bqd', p, v,
                         preferred_element_type=jnp.float32)               # (B, T, hs)

        # Per-head projection through the matching (hs, C) slice of wp.T,
        # accumulated into a lane-dense 64-wide accumulator (replaces concat).
        acc = acc + jnp.dot(o_h.reshape(B * T, hs),
                            wo[h * hs:(h + 1) * hs, :],
                            preferred_element_type=jnp.float32)            # (B*T, C)

    y = acc + bo_ref[...]                                                  # + bias
    o_ref[...] = y.reshape(B, T, C).astype(o_ref.dtype)


@jax.jit
def multi_head_attention(x, wq, wk, wv, wp, bp):
    B, T, C = x.shape
    H, _, hs = wq.shape

    # --- host/wrapper-side weight prep (done once, outside the kernel) ---
    # Pack Wq/Wk/Wv into a single (C, 3*H*hs) matrix: column j = kind*C + h*hs + d
    # holds W{kind}[h][:, d].
    wqkv = jnp.stack([wq, wk, wv], axis=0)           # (3, H, C, hs)
    wqkv = jnp.transpose(wqkv, (2, 0, 1, 3))         # (C, 3, H, hs)
    wqkv = wqkv.reshape(C, 3 * H * hs)               # (C, 3*C)
    wo = wp.T                                        # pre-transposed proj weight
    bo = bp.reshape(1, C)

    kernel = functools.partial(_mha_kernel, num_heads=H)
    return pl.pallas_call(
        kernel,
        out_shape=jax.ShapeDtypeStruct((B, T, C), x.dtype),
        # No grid: single step, every operand resident in VMEM, fetched once.
        in_specs=[
            pl.BlockSpec(memory_space=pltpu.MemorySpace.VMEM),   # x
            pl.BlockSpec(memory_space=pltpu.MemorySpace.VMEM),   # packed Wqkv
            pl.BlockSpec(memory_space=pltpu.MemorySpace.VMEM),   # wp.T
            pl.BlockSpec(memory_space=pltpu.MemorySpace.VMEM),   # bias
        ],
        out_specs=pl.BlockSpec(memory_space=pltpu.MemorySpace.VMEM),
    )(x, wqkv, wo, bo)


def _reference(x, wq, wk, wv, wp, bp):
    """Pure-JAX reference mirroring the PyTorch forward exactly."""
    B, T, C = x.shape
    scale = C ** (-0.5)
    tril = jnp.tril(jnp.ones((T, T), dtype=bool))
    outs = []
    for h in range(wq.shape[0]):
        q = x @ wq[h]
        k = x @ wk[h]
        v = x @ wv[h]
        wei = (q @ jnp.swapaxes(k, -2, -1)) * scale
        wei = jnp.where(tril, wei, -jnp.inf)
        wei = jax.nn.softmax(wei, axis=-1)
        outs.append(wei @ v)
    out = jnp.concatenate(outs, axis=-1)
    return out @ wp.T + bp


if __name__ == "__main__":
    key = jax.random.PRNGKey(0)
    kx, kq, kk, kv, kp, kb = jax.random.split(key, 6)

    B, T = 2, 8   # T <= block_size (32)
    x = jax.random.normal(kx, (B, T, N_EMBD), dtype=jnp.float32)

    # deterministic synthetic parameters (shapes from the module's __init__)
    wq = 0.1 * jax.random.normal(kq, (NUM_HEADS, N_EMBD, HEAD_SIZE), dtype=jnp.float32)
    wk = 0.1 * jax.random.normal(kk, (NUM_HEADS, N_EMBD, HEAD_SIZE), dtype=jnp.float32)
    wv = 0.1 * jax.random.normal(kv, (NUM_HEADS, N_EMBD, HEAD_SIZE), dtype=jnp.float32)
    wp = 0.1 * jax.random.normal(kp, (N_EMBD, N_EMBD), dtype=jnp.float32)
    bp = 0.1 * jax.random.normal(kb, (N_EMBD,), dtype=jnp.float32)

    y = multi_head_attention(x, wq, wk, wv, wp, bp)
    jax.block_until_ready(y)

    y_ref = _reference(x, wq, wk, wv, wp, bp)
    assert y.shape == (B, T, N_EMBD)
    assert jnp.allclose(y, y_ref, atol=1e-5, rtol=1e-5), "mismatch vs reference"

    print("KERNEL_OK")
</pallas_src>

<mosaic_0001>
module attributes {stable_mosaic.version = 11 : i64} {
  func.func @_mha_kernel(%arg0: memref<2x8x64xf32, #tpu.memory_space<vmem>>, %arg1: memref<64x192xf32, #tpu.memory_space<vmem>>, %arg2: memref<64x64xf32, #tpu.memory_space<vmem>>, %arg3: memref<1x64xf32, #tpu.memory_space<vmem>>, %arg4: memref<2x8x64xf32, #tpu.memory_space<vmem>>) attributes {dimension_semantics = [], scalar_prefetch = 0 : i64, scratch_operands = 0 : i64, tpu.core_type = #tpu.core_type<tc>} {
    %c0 = arith.constant 0 : index
    %c0_0 = arith.constant 0 : index
    %c0_1 = arith.constant 0 : index
    %0 = vector.load %arg0[%c0, %c0_0, %c0_1] : memref<2x8x64xf32, #tpu.memory_space<vmem>>, vector<2x8x64xf32>
    %1 = vector.shape_cast %0 : vector<2x8x64xf32> to vector<16x64xf32>
    %c0_2 = arith.constant 0 : index
    %c0_3 = arith.constant 0 : index
    %2 = vector.load %arg1[%c0_2, %c0_3] : memref<64x192xf32, #tpu.memory_space<vmem>>, vector<64x192xf32>
    %cst = arith.constant dense<0.000000e+00> : vector<16x192xf32>
    %3 = tpu.matmul %1, %2, %cst {dimension_numbers = #tpu.dot_dimension_numbers<[1], [0], [0], [1], [0, 0, 1, 1], [], []>} : vector<16x64xf32>, vector<64x192xf32>, vector<16x192xf32> -> vector<16x192xf32>
    %4 = tpu.iota {dimensions = array<i32: 0>} : vector<8x8xi32>
    %5 = tpu.iota {dimensions = array<i32: 1>} : vector<8x8xi32>
    %6 = arith.cmpi sge, %4, %5 : vector<8x8xi32>
    %cst_4 = arith.constant 0.000000e+00 : f32
    %cst_5 = arith.constant -1.000000e+30 : f32
    %7 = vector.broadcast %cst_4 : f32 to vector<8x8xf32>
    %8 = vector.broadcast %cst_5 : f32 to vector<8x8xf32>
    %9 = arith.select %6, %7, %8 : vector<8x8xi1>, vector<8x8xf32>
    %c0_6 = arith.constant 0 : index
    %c0_7 = arith.constant 0 : index
    %10 = vector.load %arg2[%c0_6, %c0_7] : memref<64x64xf32, #tpu.memory_space<vmem>>, vector<64x64xf32>
    %cst_8 = arith.constant 0.000000e+00 : f32
    %11 = vector.broadcast %cst_8 : f32 to vector<16x64xf32>
    %12 = vector.extract_strided_slice %3 {offsets = [0, 0], sizes = [16, 16], strides = [1, 1]} : vector<16x192xf32> to vector<16x16xf32>
    %cst_9 = arith.constant 1.250000e-01 : f32
    %13 = vector.broadcast %cst_9 : f32 to vector<16x16xf32>
    %14 = arith.mulf %12, %13 : vector<16x16xf32>
    %15 = vector.shape_cast %14 : vector<16x16xf32> to vector<2x8x16xf32>
    %16 = vector.extract_strided_slice %3 {offsets = [0, 64], sizes = [16, 16], strides = [1, 1]} : vector<16x192xf32> to vector<16x16xf32>
    %17 = vector.shape_cast %16 : vector<16x16xf32> to vector<2x8x16xf32>
    %18 = vector.extract_strided_slice %3 {offsets = [0, 128], sizes = [16, 16], strides = [1, 1]} : vector<16x192xf32> to vector<16x16xf32>
    %19 = vector.shape_cast %18 : vector<16x16xf32> to vector<2x8x16xf32>
    "tpu.trace_start"() <{level = 10 : i32, message = "bqd,bkd->bqk"}> : () -> ()
    %cst_10 = arith.constant dense<0.000000e+00> : vector<2x8x8xf32>
    %20 = tpu.matmul %15, %17, %cst_10 {dimension_numbers = #tpu.dot_dimension_numbers<[2], [2], [1], [1], [0, 0, 0, 1, 1, 1], [0], [0]>} : vector<2x8x16xf32>, vector<2x8x16xf32>, vector<2x8x8xf32> -> vector<2x8x8xf32>
    "tpu.trace_stop"() : () -> ()
    %21 = vector.shape_cast %9 : vector<8x8xf32> to vector<1x8x8xf32>
    %22 = vector.broadcast %21 : vector<1x8x8xf32> to vector<2x8x8xf32>
    %23 = arith.addf %20, %22 : vector<2x8x8xf32>
    %cst_11 = arith.constant dense<0xFF800000> : vector<2x8xf32>
    %24 = vector.multi_reduction <maximumf>, %23, %cst_11 [2] : vector<2x8x8xf32> to vector<2x8xf32>
    %cst_12 = arith.constant 0xFF800000 : f32
    %25 = vector.broadcast %cst_12 : f32 to vector<2x8xf32>
    %26 = arith.maximumf %25, %24 : vector<2x8xf32>
    %27 = vector.shape_cast %26 : vector<2x8xf32> to vector<2x8x1xf32>
    %28 = vector.broadcast %27 : vector<2x8x1xf32> to vector<2x8x8xf32>
    %29 = arith.subf %23, %28 : vector<2x8x8xf32>
    %30 = math.exp %29 : vector<2x8x8xf32>
    %cst_13 = arith.constant dense<0.000000e+00> : vector<2x8xf32>
    %31 = vector.multi_reduction <add>, %30, %cst_13 [2] : vector<2x8x8xf32> to vector<2x8xf32>
    %32 = vector.shape_cast %31 : vector<2x8xf32> to vector<2x8x1xf32>
    %33 = vector.broadcast %32 : vector<2x8x1xf32> to vector<2x8x8xf32>
    %34 = arith.divf %30, %33 : vector<2x8x8xf32>
    "tpu.trace_start"() <{level = 10 : i32, message = "bqk,bkd->bqd"}> : () -> ()
    %cst_14 = arith.constant dense<0.000000e+00> : vector<2x8x16xf32>
    %35 = tpu.matmul %34, %19, %cst_14 {dimension_numbers = #tpu.dot_dimension_numbers<[2], [1], [1], [2], [0, 0, 0, 1, 1, 2], [0], [0]>} : vector<2x8x8xf32>, vector<2x8x16xf32>, vector<2x8x16xf32> -> vector<2x8x16xf32>
    "tpu.trace_stop"() : () -> ()
    %36 = vector.shape_cast %35 : vector<2x8x16xf32> to vector<16x16xf32>
    %37 = vector.extract_strided_slice %10 {offsets = [0, 0], sizes = [16, 64], strides = [1, 1]} : vector<64x64xf32> to vector<16x64xf32>
    %cst_15 = arith.constant dense<0.000000e+00> : vector<16x64xf32>
    %38 = tpu.matmul %36, %37, %cst_15 {dimension_numbers = #tpu.dot_dimension_numbers<[1], [0], [0], [1], [0, 0, 1, 1], [], []>} : vector<16x16xf32>, vector<16x64xf32>, vector<16x64xf32> -> vector<16x64xf32>
    %39 = arith.addf %11, %38 : vector<16x64xf32>
    %40 = vector.extract_strided_slice %3 {offsets = [0, 16], sizes = [16, 16], strides = [1, 1]} : vector<16x192xf32> to vector<16x16xf32>
    %cst_16 = arith.constant 1.250000e-01 : f32
    %41 = vector.broadcast %cst_16 : f32 to vector<16x16xf32>
    %42 = arith.mulf %40, %41 : vector<16x16xf32>
    %43 = vector.shape_cast %42 : vector<16x16xf32> to vector<2x8x16xf32>
    %44 = vector.extract_strided_slice %3 {offsets = [0, 80], sizes = [16, 16], strides = [1, 1]} : vector<16x192xf32> to vector<16x16xf32>
    %45 = vector.shape_cast %44 : vector<16x16xf32> to vector<2x8x16xf32>
    %46 = vector.extract_strided_slice %3 {offsets = [0, 144], sizes = [16, 16], strides = [1, 1]} : vector<16x192xf32> to vector<16x16xf32>
    %47 = vector.shape_cast %46 : vector<16x16xf32> to vector<2x8x16xf32>
    "tpu.trace_start"() <{level = 10 : i32, message = "bqd,bkd->bqk"}> : () -> ()
    %cst_17 = arith.constant dense<0.000000e+00> : vector<2x8x8xf32>
    %48 = tpu.matmul %43, %45, %cst_17 {dimension_numbers = #tpu.dot_dimension_numbers<[2], [2], [1], [1], [0, 0, 0, 1, 1, 1], [0], [0]>} : vector<2x8x16xf32>, vector<2x8x16xf32>, vector<2x8x8xf32> -> vector<2x8x8xf32>
    "tpu.trace_stop"() : () -> ()
    %49 = vector.shape_cast %9 : vector<8x8xf32> to vector<1x8x8xf32>
    %50 = vector.broadcast %49 : vector<1x8x8xf32> to vector<2x8x8xf32>
    %51 = arith.addf %48, %50 : vector<2x8x8xf32>
    %cst_18 = arith.constant dense<0xFF800000> : vector<2x8xf32>
    %52 = vector.multi_reduction <maximumf>, %51, %cst_18 [2] : vector<2x8x8xf32> to vector<2x8xf32>
    %cst_19 = arith.constant 0xFF800000 : f32
    %53 = vector.broadcast %cst_19 : f32 to vector<2x8xf32>
    %54 = arith.maximumf %53, %52 : vector<2x8xf32>
    %55 = vector.shape_cast %54 : vector<2x8xf32> to vector<2x8x1xf32>
    %56 = vector.broadcast %55 : vector<2x8x1xf32> to vector<2x8x8xf32>
    %57 = arith.subf %51, %56 : vector<2x8x8xf32>
    %58 = math.exp %57 : vector<2x8x8xf32>
    %cst_20 = arith.constant dense<0.000000e+00> : vector<2x8xf32>
    %59 = vector.multi_reduction <add>, %58, %cst_20 [2] : vector<2x8x8xf32> to vector<2x8xf32>
    %60 = vector.shape_cast %59 : vector<2x8xf32> to vector<2x8x1xf32>
    %61 = vector.broadcast %60 : vector<2x8x1xf32> to vector<2x8x8xf32>
    %62 = arith.divf %58, %61 : vector<2x8x8xf32>
    "tpu.trace_start"() <{level = 10 : i32, message = "bqk,bkd->bqd"}> : () -> ()
    %cst_21 = arith.constant dense<0.000000e+00> : vector<2x8x16xf32>
    %63 = tpu.matmul %62, %47, %cst_21 {dimension_numbers = #tpu.dot_dimension_numbers<[2], [1], [1], [2], [0, 0, 0, 1, 1, 2], [0], [0]>} : vector<2x8x8xf32>, vector<2x8x16xf32>, vector<2x8x16xf32> -> vector<2x8x16xf32>
    "tpu.trace_stop"() : () -> ()
    %64 = vector.shape_cast %63 : vector<2x8x16xf32> to vector<16x16xf32>
    %65 = vector.extract_strided_slice %10 {offsets = [16, 0], sizes = [16, 64], strides = [1, 1]} : vector<64x64xf32> to vector<16x64xf32>
    %cst_22 = arith.constant dense<0.000000e+00> : vector<16x64xf32>
    %66 = tpu.matmul %64, %65, %cst_22 {dimension_numbers = #tpu.dot_dimension_numbers<[1], [0], [0], [1], [0, 0, 1, 1], [], []>} : vector<16x16xf32>, vector<16x64xf32>, vector<16x64xf32> -> vector<16x64xf32>
    %67 = arith.addf %39, %66 : vector<16x64xf32>
    %68 = vector.extract_strided_slice %3 {offsets = [0, 32], sizes = [16, 16], strides = [1, 1]} : vector<16x192xf32> to vector<16x16xf32>
    %cst_23 = arith.constant 1.250000e-01 : f32
    %69 = vector.broadcast %cst_23 : f32 to vector<16x16xf32>
    %70 = arith.mulf %68, %69 : vector<16x16xf32>
    %71 = vector.shape_cast %70 : vector<16x16xf32> to vector<2x8x16xf32>
    %72 = vector.extract_strided_slice %3 {offsets = [0, 96], sizes = [16, 16], strides = [1, 1]} : vector<16x192xf32> to vector<16x16xf32>
    %73 = vector.shape_cast %72 : vector<16x16xf32> to vector<2x8x16xf32>
    %74 = vector.extract_strided_slice %3 {offsets = [0, 160], sizes = [16, 16], strides = [1, 1]} : vector<16x192xf32> to vector<16x16xf32>
    %75 = vector.shape_cast %74 : vector<16x16xf32> to vector<2x8x16xf32>
    "tpu.trace_start"() <{level = 10 : i32, message = "bqd,bkd->bqk"}> : () -> ()
    %cst_24 = arith.constant dense<0.000000e+00> : vector<2x8x8xf32>
    %76 = tpu.matmul %71, %73, %cst_24 {dimension_numbers = #tpu.dot_dimension_numbers<[2], [2], [1], [1], [0, 0, 0, 1, 1, 1], [0], [0]>} : vector<2x8x16xf32>, vector<2x8x16xf32>, vector<2x8x8xf32> -> vector<2x8x8xf32>
    "tpu.trace_stop"() : () -> ()
    %77 = vector.shape_cast %9 : vector<8x8xf32> to vector<1x8x8xf32>
    %78 = vector.broadcast %77 : vector<1x8x8xf32> to vector<2x8x8xf32>
    %79 = arith.addf %76, %78 : vector<2x8x8xf32>
    %cst_25 = arith.constant dense<0xFF800000> : vector<2x8xf32>
    %80 = vector.multi_reduction <maximumf>, %79, %cst_25 [2] : vector<2x8x8xf32> to vector<2x8xf32>
    %cst_26 = arith.constant 0xFF800000 : f32
    %81 = vector.broadcast %cst_26 : f32 to vector<2x8xf32>
    %82 = arith.maximumf %81, %80 : vector<2x8xf32>
    %83 = vector.shape_cast %82 : vector<2x8xf32> to vector<2x8x1xf32>
    %84 = vector.broadcast %83 : vector<2x8x1xf32> to vector<2x8x8xf32>
    %85 = arith.subf %79, %84 : vector<2x8x8xf32>
    %86 = math.exp %85 : vector<2x8x8xf32>
    %cst_27 = arith.constant dense<0.000000e+00> : vector<2x8xf32>
    %87 = vector.multi_reduction <add>, %86, %cst_27 [2] : vector<2x8x8xf32> to vector<2x8xf32>
    %88 = vector.shape_cast %87 : vector<2x8xf32> to vector<2x8x1xf32>
    %89 = vector.broadcast %88 : vector<2x8x1xf32> to vector<2x8x8xf32>
    %90 = arith.divf %86, %89 : vector<2x8x8xf32>
    "tpu.trace_start"() <{level = 10 : i32, message = "bqk,bkd->bqd"}> : () -> ()
    %cst_28 = arith.constant dense<0.000000e+00> : vector<2x8x16xf32>
    %91 = tpu.matmul %90, %75, %cst_28 {dimension_numbers = #tpu.dot_dimension_numbers<[2], [1], [1], [2], [0, 0, 0, 1, 1, 2], [0], [0]>} : vector<2x8x8xf32>, vector<2x8x16xf32>, vector<2x8x16xf32> -> vector<2x8x16xf32>
    "tpu.trace_stop"() : () -> ()
    %92 = vector.shape_cast %91 : vector<2x8x16xf32> to vector<16x16xf32>
    %93 = vector.extract_strided_slice %10 {offsets = [32, 0], sizes = [16, 64], strides = [1, 1]} : vector<64x64xf32> to vector<16x64xf32>
    %cst_29 = arith.constant dense<0.000000e+00> : vector<16x64xf32>
    %94 = tpu.matmul %92, %93, %cst_29 {dimension_numbers = #tpu.dot_dimension_numbers<[1], [0], [0], [1], [0, 0, 1, 1], [], []>} : vector<16x16xf32>, vector<16x64xf32>, vector<16x64xf32> -> vector<16x64xf32>
    %95 = arith.addf %67, %94 : vector<16x64xf32>
    %96 = vector.extract_strided_slice %3 {offsets = [0, 48], sizes = [16, 16], strides = [1, 1]} : vector<16x192xf32> to vector<16x16xf32>
    %cst_30 = arith.constant 1.250000e-01 : f32
    %97 = vector.broadcast %cst_30 : f32 to vector<16x16xf32>
    %98 = arith.mulf %96, %97 : vector<16x16xf32>
    %99 = vector.shape_cast %98 : vector<16x16xf32> to vector<2x8x16xf32>
    %100 = vector.extract_strided_slice %3 {offsets = [0, 112], sizes = [16, 16], strides = [1, 1]} : vector<16x192xf32> to vector<16x16xf32>
    %101 = vector.shape_cast %100 : vector<16x16xf32> to vector<2x8x16xf32>
    %102 = vector.extract_strided_slice %3 {offsets = [0, 176], sizes = [16, 16], strides = [1, 1]} : vector<16x192xf32> to vector<16x16xf32>
    %103 = vector.shape_cast %102 : vector<16x16xf32> to vector<2x8x16xf32>
    "tpu.trace_start"() <{level = 10 : i32, message = "bqd,bkd->bqk"}> : () -> ()
    %cst_31 = arith.constant dense<0.000000e+00> : vector<2x8x8xf32>
    %104 = tpu.matmul %99, %101, %cst_31 {dimension_numbers = #tpu.dot_dimension_numbers<[2], [2], [1], [1], [0, 0, 0, 1, 1, 1], [0], [0]>} : vector<2x8x16xf32>, vector<2x8x16xf32>, vector<2x8x8xf32> -> vector<2x8x8xf32>
    "tpu.trace_stop"() : () -> ()
    %105 = vector.shape_cast %9 : vector<8x8xf32> to vector<1x8x8xf32>
    %106 = vector.broadcast %105 : vector<1x8x8xf32> to vector<2x8x8xf32>
    %107 = arith.addf %104, %106 : vector<2x8x8xf32>
    %cst_32 = arith.constant dense<0xFF800000> : vector<2x8xf32>
    %108 = vector.multi_reduction <maximumf>, %107, %cst_32 [2] : vector<2x8x8xf32> to vector<2x8xf32>
    %cst_33 = arith.constant 0xFF800000 : f32
    %109 = vector.broadcast %cst_33 : f32 to vector<2x8xf32>
    %110 = arith.maximumf %109, %108 : vector<2x8xf32>
    %111 = vector.shape_cast %110 : vector<2x8xf32> to vector<2x8x1xf32>
    %112 = vector.broadcast %111 : vector<2x8x1xf32> to vector<2x8x8xf32>
    %113 = arith.subf %107, %112 : vector<2x8x8xf32>
    %114 = math.exp %113 : vector<2x8x8xf32>
    %cst_34 = arith.constant dense<0.000000e+00> : vector<2x8xf32>
    %115 = vector.multi_reduction <add>, %114, %cst_34 [2] : vector<2x8x8xf32> to vector<2x8xf32>
    %116 = vector.shape_cast %115 : vector<2x8xf32> to vector<2x8x1xf32>
    %117 = vector.broadcast %116 : vector<2x8x1xf32> to vector<2x8x8xf32>
    %118 = arith.divf %114, %117 : vector<2x8x8xf32>
    "tpu.trace_start"() <{level = 10 : i32, message = "bqk,bkd->bqd"}> : () -> ()
    %cst_35 = arith.constant dense<0.000000e+00> : vector<2x8x16xf32>
    %119 = tpu.matmul %118, %103, %cst_35 {dimension_numbers = #tpu.dot_dimension_numbers<[2], [1], [1], [2], [0, 0, 0, 1, 1, 2], [0], [0]>} : vector<2x8x8xf32>, vector<2x8x16xf32>, vector<2x8x16xf32> -> vector<2x8x16xf32>
    "tpu.trace_stop"() : () -> ()
    %120 = vector.shape_cast %119 : vector<2x8x16xf32> to vector<16x16xf32>
    %121 = vector.extract_strided_slice %10 {offsets = [48, 0], sizes = [16, 64], strides = [1, 1]} : vector<64x64xf32> to vector<16x64xf32>
    %cst_36 = arith.constant dense<0.000000e+00> : vector<16x64xf32>
    %122 = tpu.matmul %120, %121, %cst_36 {dimension_numbers = #tpu.dot_dimension_numbers<[1], [0], [0], [1], [0, 0, 1, 1], [], []>} : vector<16x16xf32>, vector<16x64xf32>, vector<16x64xf32> -> vector<16x64xf32>
    %123 = arith.addf %95, %122 : vector<16x64xf32>
    %c0_37 = arith.constant 0 : index
    %c0_38 = arith.constant 0 : index
    %124 = vector.load %arg3[%c0_37, %c0_38] : memref<1x64xf32, #tpu.memory_space<vmem>>, vector<1x64xf32>
    %125 = vector.broadcast %124 : vector<1x64xf32> to vector<16x64xf32>
    %126 = arith.addf %123, %125 : vector<16x64xf32>
    %127 = vector.shape_cast %126 : vector<16x64xf32> to vector<2x8x64xf32>
    %c0_39 = arith.constant 0 : index
    %c0_40 = arith.constant 0 : index
    %c0_41 = arith.constant 0 : index
    %128 = vector.load %arg4[%c0_39, %c0_40, %c0_41] : memref<2x8x64xf32, #tpu.memory_space<vmem>>, vector<2x8x64xf32>
    tpu.vector_store %arg4[%c0_39, %c0_40, %c0_41], %127 {strides = array<i32>} : memref<2x8x64xf32, #tpu.memory_space<vmem>>, vector<2x8x64xf32>,
    return
  }
}

</mosaic_0001>

<llo_original>
// kernel: multi_head_attention.1
$region0: #{multi_head_attention.1}
  #allocation0 [shape = 'u32[]', space=smem, size = 0x4, offset = 0x4, fixed_abs, tag = 'smem constant byte address 0x4 - core index']
  #allocation1 [shape = 'u32[72,128]{1,0:T(1,128)}', space=vmem, size = 0x9000, scoped, tag = 'internal scratch']
  %s0 = inlined_call_operand.vmem [shape: f32[2,8,64], index: 0, kind: input, shape index: {}]
  %s1 = inlined_call_operand.vmem [shape: f32[64,192], index: 1, kind: input, shape index: {}]
  %s2 = inlined_call_operand.vmem [shape: f32[64,64], index: 2, kind: input, shape index: {}]
  %s3 = inlined_call_operand.vmem [shape: f32[1,64], index: 3, kind: input, shape index: {}]
  %s4 = inlined_call_operand.hbm [shape: f32[2,8,64], index: 4, kind: output, shape index: {}]
  %s5 = sld [smem:[#allocation0]]
  $region26: #{multi_head_attention.1} parent=0
    _
  %s7 = ssub.s32 1, %s5
  %s8 = scalar_select 0, %s7, %s5
  $region1: #{multi_head_attention.1} parent=0
    #allocation2 [shape = 'u8[8192]{0}', space=vmem, size = 0x2000, scoped, tag = 'output window, operand 0, single buffered']
    #allocation3 [shape = 's32[1]{0}', space=sflag, size = 0x4, scoped, tag = 'scoped memory for multi_head_attention.1']
    %9 = vsyncpa [#allocation3], 0
    // Predicated region
    $region2: #{multi_head_attention.1} parent=1 // pred_check
      _
    $region3: #{multi_head_attention.1} parent=1 // pred_check_branch
      %11 = sbr.rel (0) target = $region5
    $region4: #{multi_head_attention.1} parent=1 // pred_region
      _
    $region5: #{multi_head_attention.1} parent=1 // pred_fallthru
      _
    // Predicated region
    $region6: #{multi_head_attention.1} parent=1 // pred_check
      _
    $region7: #{multi_head_attention.1} parent=1 // pred_check_branch
      %13 = sbr.rel (0) target = $region9
    $region8: #{multi_head_attention.1} parent=1 // pred_region
      _
    $region9: #{multi_head_attention.1} parent=1 // pred_fallthru
      _
    // Predicated region
    $region10: #{multi_head_attention.1} parent=1 // pred_check
      _
    $region11: #{multi_head_attention.1} parent=1 // pred_check_branch
      %15 = sbr.rel (0) target = $region13
    $region12: #{multi_head_attention.1} parent=1 // pred_region
      _
    $region13: #{multi_head_attention.1} parent=1 // pred_fallthru
      _
    // Predicated region
    $region14: #{multi_head_attention.1} parent=1 // pred_check
      _
    $region15: #{multi_head_attention.1} parent=1 // pred_check_branch
      %17 = sbr.rel (0) target = $region17
    $region16: #{multi_head_attention.1} parent=1 // pred_region
      _
    $region17: #{multi_head_attention.1} parent=1 // pred_fallthru
      _
    %v18 = vld [vmem:[%s0] sm:$0xff]
    %v19 = vld [vmem:[%s0 + $0x8] sm:$0xff]
    %v20 = vld [vmem:[%s1] sm:$0xff]
    %v21 = vld [vmem:[%s1 + $0x8] sm:$0xff]
    %v22 = vld [vmem:[%s1 + $0x10] sm:$0xff]
    %v23 = vld [vmem:[%s1 + $0x18] sm:$0xff]
    %v24 = vld [vmem:[%s1 + $0x20] sm:$0xff]
    %v25 = vld [vmem:[%s1 + $0x28] sm:$0xff]
    %v26 = vld [vmem:[%s1 + $0x30] sm:$0xff]
    %v27 = vld [vmem:[%s1 + $0x38] sm:$0xff]
    %v28 = vld [vmem:[%s1 + $0x40] sm:$0xff]
    %v29 = vld [vmem:[%s1 + $0x48] sm:$0xff]
    %v30 = vld [vmem:[%s1 + $0x50] sm:$0xff]
    %v31 = vld [vmem:[%s1 + $0x58] sm:$0xff]
    %v32 = vld [vmem:[%s1 + $0x60] sm:$0xff]
    %v33 = vld [vmem:[%s1 + $0x68] sm:$0xff]
    %v34 = vld [vmem:[%s1 + $0x70] sm:$0xff]
    %v35 = vld [vmem:[%s1 + $0x78] sm:$0xff]
    %vm36 = vcmask 523264
    %v38 = vsel %vm36, %v18, 0
    %v41 = vsel %vm36, %v19, 0
    %43 = vmatpush.msra.mxu0 0.0
    %44 = vmatpush.msra.mxu0 0.0
    %45 = vmatpush.msra.mxu0 0.0
    %46 = vmatpush.msra.mxu0 0.0
    %47 = vmatpush.msra.mxu0 0.0
    %48 = vmatpush.msra.mxu0 0.0
    %49 = vmatpush.msra.mxu0 0.0
    %50 = vmatpush.msra.mxu0 0.0
    %51 = vmatpush.msra.mxu0 %v34
    %52 = vmatpush.msra.mxu0 %v32
    %53 = vmatpush.msra.mxu0 %v30
    %54 = vmatpush.msra.mxu0 %v28
    %55 = vmatpush.msra.mxu0 %v26
    %56 = vmatpush.msra.mxu0 %v24
    %57 = vmatpush.msra.mxu0 %v22
    %58 = vmatpush.msra.mxu0 %v20
    %59 = vmatmul.f32.gmra.mxu0 %v38
    %v60 = vpop.f32.mrf.mxu0
    %v61 = vadd.f32 0.0, %v60
    %62 = vmatmul.f32.gmra.mxu0 %v41
    %v63 = vpop.f32.mrf.mxu0
    %v64 = vadd.f32 0.0, %v63
    %65 = vdwg.mxu0
    %66 = vmatpush.msra.mxu0 0.0
    %67 = vmatpush.msra.mxu0 0.0
    %68 = vmatpush.msra.mxu0 0.0
    %69 = vmatpush.msra.mxu0 0.0
    %70 = vmatpush.msra.mxu0 0.0
    %71 = vmatpush.msra.mxu0 0.0
    %72 = vmatpush.msra.mxu0 0.0
    %73 = vmatpush.msra.mxu0 0.0
    %74 = vmatpush.msra.mxu0 %v35
    %75 = vmatpush.msra.mxu0 %v33
    %76 = vmatpush.msra.mxu0 %v31
    %77 = vmatpush.msra.mxu0 %v29
    %78 = vmatpush.msra.mxu0 %v27
    %79 = vmatpush.msra.mxu0 %v25
    %80 = vmatpush.msra.mxu0 %v23
    %81 = vmatpush.msra.mxu0 %v21
    %82 = vmatmul.f32.gmra.mxu0 %v38
    %v83 = vpop.f32.mrf.mxu0
    %v84 = vadd.f32 0.0, %v83
    %85 = vmatmul.f32.gmra.mxu0 %v41
    %v86 = vpop.f32.mrf.mxu0
    %v87 = vadd.f32 0.0, %v86
    %88 = vdwg.mxu0
    %v89 = vlaneseq
    %v90 = vshrl.u32 %v89, 7
    %v91 = vlaneseq
    %v92 = vand.u32 %v91, 127
    %vm93 = vcmp.ge.s32.totalorder %v90, %v92
    %v94 = vsel %vm93, 0.0, -1e+30
    %v95 = vld [vmem:[%s2] sm:$0xff]
    %v96 = vld [vmem:[%s2 + $0x8] sm:$0xff]
    %v97 = vld [vmem:[%s2 + $0x10] sm:$0xff]
    %v98 = vld [vmem:[%s2 + $0x18] sm:$0xff]
    %v99 = vld [vmem:[%s2 + $0x20] sm:$0xff]
    %v100 = vld [vmem:[%s2 + $0x28] sm:$0xff]
    %v101 = vld [vmem:[%s2 + $0x30] sm:$0xff]
    %v102 = vld [vmem:[%s2 + $0x38] sm:$0xff]
    %v103 = vmul.f32 %v61, 0.125
    %v104 = vmul.f32 %v64, 0.125
    %106 = vrot.lane.b32.xlu0 %v61, 64
    %v107 = vpop.permute.xlu0 %106
    %vm108 = vcmask 130048
    %v110 = vsel %vm108, %v103, 0
    %v112 = vsel %vm108, %v107, 0
    %114 = vmatpush.xpose.msra.mxu0 0.0
    %115 = vmatpush.xpose.msra.mxu0 0.0
    %116 = vmatpush.xpose.msra.mxu0 0.0
    %117 = vmatpush.xpose.msra.mxu0 0.0
    %118 = vmatpush.xpose.msra.mxu0 0.0
    %119 = vmatpush.xpose.msra.mxu0 0.0
    %120 = vmatpush.xpose.msra.mxu0 0.0
    %121 = vmatpush.xpose.msra.mxu0 0.0
    %122 = vmatpush.xpose.msra.mxu0 0.0
    %123 = vmatpush.xpose.msra.mxu0 0.0
    %124 = vmatpush.xpose.msra.mxu0 0.0
    %125 = vmatpush.xpose.msra.mxu0 0.0
    %126 = vmatpush.xpose.msra.mxu0 0.0
    %127 = vmatpush.xpose.msra.mxu0 0.0
    %128 = vmatpush.xpose.msra.mxu0 0.0
    %129 = vmatpush.xpose.msra.mxu0 %v112
    %130 = vmatmul.f32.gmra.mxu0 %v110
    %v131 = vpop.f32.mrf.mxu0
    %v132 = vadd.f32 %v94, %v131
    %133 = vdwg.mxu0
    %135 = vrot.lane.b32.xlu0 %v64, 64
    %v136 = vpop.permute.xlu0 %135
    %v138 = vsel %vm108, %v104, 0
    %v140 = vsel %vm108, %v136, 0
    %142 = vmatpush.xpose.msra.mxu0 0.0
    %143 = vmatpush.xpose.msra.mxu0 0.0
    %144 = vmatpush.xpose.msra.mxu0 0.0
    %145 = vmatpush.xpose.msra.mxu0 0.0
    %146 = vmatpush.xpose.msra.mxu0 0.0
    %147 = vmatpush.xpose.msra.mxu0 0.0
    %148 = vmatpush.xpose.msra.mxu0 0.0
    %149 = vmatpush.xpose.msra.mxu0 0.0
    %150 = vmatpush.xpose.msra.mxu0 0.0
    %151 = vmatpush.xpose.msra.mxu0 0.0
    %152 = vmatpush.xpose.msra.mxu0 0.0
    %153 = vmatpush.xpose.msra.mxu0 0.0
    %154 = vmatpush.xpose.msra.mxu0 0.0
    %155 = vmatpush.xpose.msra.mxu0 0.0
    %156 = vmatpush.xpose.msra.mxu0 0.0
    %157 = vmatpush.xpose.msra.mxu0 %v140
    %158 = vmatmul.f32.gmra.mxu0 %v138
    %v159 = vpop.f32.mrf.mxu0
    %v160 = vadd.f32 %v94, %v159
    %161 = vdwg.mxu0
    %vm162 = vcmask 64512
    %v163 = vsel %vm162, %v132, -inf
    %164 = vmax.xlane.f32.xlu0 %v163
    %v165 = vpop.xlane.xlu0 %164
    %v166 = vsel %vm162, %v160, -inf
    %167 = vmax.xlane.f32.xlu0 %v166
    %v168 = vpop.xlane.xlu0 %167
    %v169 = vsub.f32 %v132, %v165
    %v170 = vsub.f32 %v160, %v168
    %v171 = vmul.f32 %v169, 1.442695
    %v172 = vpow.pop %v171
    %v173 = vmul.f32 %v170, 1.442695
    %v174 = vpow.pop %v173
    %v175 = vsel %vm162, %v172, 0.0
    %176 = vadd.xlane.f32.xlu0 %v175
    %v177 = vpop.xlane.xlu0 %176
    %v178 = vsel %vm162, %v174, 0.0
    %179 = vadd.xlane.f32.xlu0 %v178
    %v180 = vpop.xlane.xlu0 %179
    %v181 = vrcp.pop %v177
    %v182 = vmul.f32 %v177, %v181
    %v183 = vsub.f32 1.0, %v182
    %v184 = vmul.f32 %v181, %v183
    %v185 = vadd.f32 %v181, %v184
    %vm186 = vweird.f32 %v177
    %vm187 = vweird.f32 %v181
    %vm188 = vmor %vm186, %vm187
    %v189 = vsel %vm188, %v181, %v185
    %v190 = vand.u32 2147483647, %v177
    %vm191 = vcmp.eq.f32.partialorder %v190, 8.507059e+37
    %v192 = vand.u32 %v177, 2147483648
    %v193 = vor.u32 1.1754944e-38, %v192
    %v194 = vsel %vm191, %v193, %v189
    %v195 = vmul.f32 %v172, %v194
    %v196 = vrcp.pop %v180
    %v197 = vmul.f32 %v180, %v196
    %v198 = vsub.f32 1.0, %v197
    %v199 = vmul.f32 %v196, %v198
    %v200 = vadd.f32 %v196, %v199
    %vm201 = vweird.f32 %v180
    %vm202 = vweird.f32 %v196
    %vm203 = vmor %vm201, %vm202
    %v204 = vsel %vm203, %v196, %v200
    %v205 = vand.u32 2147483647, %v180
    %vm206 = vcmp.eq.f32.partialorder %v205, 8.507059e+37
    %v207 = vand.u32 %v180, 2147483648
    %v208 = vor.u32 1.1754944e-38, %v207
    %v209 = vsel %vm206, %v208, %v204
    %v210 = vmul.f32 %v174, %v209
    %v212 = vsel %vm162, %v195, 0
    %214 = vmatpush.msra.mxu0 0.0
    %215 = vmatpush.msra.mxu0 0.0
    %216 = vmatpush.msra.mxu0 0.0
    %217 = vmatpush.msra.mxu0 0.0
    %218 = vmatpush.msra.mxu0 0.0
    %219 = vmatpush.msra.mxu0 0.0
    %220 = vmatpush.msra.mxu0 0.0
    %221 = vmatpush.msra.mxu0 0.0
    %222 = vmatpush.msra.mxu0 0.0
    %223 = vmatpush.msra.mxu0 0.0
    %224 = vmatpush.msra.mxu0 0.0
    %225 = vmatpush.msra.mxu0 0.0
    %226 = vmatpush.msra.mxu0 0.0
    %227 = vmatpush.msra.mxu0 0.0
    %228 = vmatpush.msra.mxu0 0.0
    %229 = vmatpush.msra.mxu0 %v84
    %230 = vmatmul.f32.gmra.mxu0 %v212
    %v231 = vpop.f32.mrf.mxu0
    %v232 = vadd.f32 0.0, %v231
    %233 = vdwg.mxu0
    %v235 = vsel %vm162, %v210, 0
    %237 = vmatpush.msra.mxu0 0.0
    %238 = vmatpush.msra.mxu0 0.0
    %239 = vmatpush.msra.mxu0 0.0
    %240 = vmatpush.msra.mxu0 0.0
    %241 = vmatpush.msra.mxu0 0.0
    %242 = vmatpush.msra.mxu0 0.0
    %243 = vmatpush.msra.mxu0 0.0
    %244 = vmatpush.msra.mxu0 0.0
    %245 = vmatpush.msra.mxu0 0.0
    %246 = vmatpush.msra.mxu0 0.0
    %247 = vmatpush.msra.mxu0 0.0
    %248 = vmatpush.msra.mxu0 0.0
    %249 = vmatpush.msra.mxu0 0.0
    %250 = vmatpush.msra.mxu0 0.0
    %251 = vmatpush.msra.mxu0 0.0
    %252 = vmatpush.msra.mxu0 %v87
    %253 = vmatmul.f32.gmra.mxu0 %v235
    %v254 = vpop.f32.mrf.mxu0
    %v255 = vadd.f32 0.0, %v254
    %256 = vdwg.mxu0
    %257 = vrot.lane.b32.xlu0 %v103, 112
    %v258 = vpop.permute.xlu0 %257
    %259 = vrot.lane.b32.xlu0 %v61, 48
    %v260 = vpop.permute.xlu0 %259
    %v261 = vsel %vm108, %v258, 0
    %v263 = vsel %vm108, %v260, 0
    %265 = vmatpush.xpose.msra.mxu0 0.0
    %266 = vmatpush.xpose.msra.mxu0 0.0
    %267 = vmatpush.xpose.msra.mxu0 0.0
    %268 = vmatpush.xpose.msra.mxu0 0.0
    %269 = vmatpush.xpose.msra.mxu0 0.0
    %270 = vmatpush.xpose.msra.mxu0 0.0
    %271 = vmatpush.xpose.msra.mxu0 0.0
    %272 = vmatpush.xpose.msra.mxu0 0.0
    %273 = vmatpush.xpose.msra.mxu0 0.0
    %274 = vmatpush.xpose.msra.mxu0 0.0
    %275 = vmatpush.xpose.msra.mxu0 0.0
    %276 = vmatpush.xpose.msra.mxu0 0.0
    %277 = vmatpush.xpose.msra.mxu0 0.0
    %278 = vmatpush.xpose.msra.mxu0 0.0
    %279 = vmatpush.xpose.msra.mxu0 0.0
    %280 = vmatpush.xpose.msra.mxu0 %v263
    %281 = vmatmul.f32.gmra.mxu0 %v261
    %v282 = vpop.f32.mrf.mxu0
    %v283 = vadd.f32 %v94, %v282
    %284 = vdwg.mxu0
    %285 = vrot.lane.b32.xlu0 %v104, 112
    %v286 = vpop.permute.xlu0 %285
    %287 = vrot.lane.b32.xlu0 %v64, 48
    %v288 = vpop.permute.xlu0 %287
    %v289 = vsel %vm108, %v286, 0
    %v291 = vsel %vm108, %v288, 0
    %293 = vmatpush.xpose.msra.mxu0 0.0
    %294 = vmatpush.xpose.msra.mxu0 0.0
    %295 = vmatpush.xpose.msra.mxu0 0.0
    %296 = vmatpush.xpose.msra.mxu0 0.0
    %297 = vmatpush.xpose.msra.mxu0 0.0
    %298 = vmatpush.xpose.msra.mxu0 0.0
    %299 = vmatpush.xpose.msra.mxu0 0.0
    %300 = vmatpush.xpose.msra.mxu0 0.0
    %301 = vmatpush.xpose.msra.mxu0 0.0
    %302 = vmatpush.xpose.msra.mxu0 0.0
    %303 = vmatpush.xpose.msra.mxu0 0.0
    %304 = vmatpush.xpose.msra.mxu0 0.0
    %305 = vmatpush.xpose.msra.mxu0 0.0
    %306 = vmatpush.xpose.msra.mxu0 0.0
    %307 = vmatpush.xpose.msra.mxu0 0.0
    %308 = vmatpush.xpose.msra.mxu0 %v291
    %309 = vmatmul.f32.gmra.mxu0 %v289
    %v310 = vpop.f32.mrf.mxu0
    %v311 = vadd.f32 %v94, %v310
    %312 = vdwg.mxu0
    %v313 = vsel %vm162, %v283, -inf
    %314 = vmax.xlane.f32.xlu0 %v313
    %v315 = vpop.xlane.xlu0 %314
    %v316 = vsel %vm162, %v311, -inf
    %317 = vmax.xlane.f32.xlu0 %v316
    %v318 = vpop.xlane.xlu0 %317
    %v319 = vsub.f32 %v283, %v315
    %v320 = vsub.f32 %v311, %v318
    %v321 = vmul.f32 %v319, 1.442695
    %v322 = vpow.pop %v321
    %v323 = vmul.f32 %v320, 1.442695
    %v324 = vpow.pop %v323
    %v325 = vsel %vm162, %v322, 0.0
    %326 = vadd.xlane.f32.xlu0 %v325
    %v327 = vpop.xlane.xlu0 %326
    %v328 = vsel %vm162, %v324, 0.0
    %329 = vadd.xlane.f32.xlu0 %v328
    %v330 = vpop.xlane.xlu0 %329
    %v331 = vrcp.pop %v327
    %v332 = vmul.f32 %v327, %v331
    %v333 = vsub.f32 1.0, %v332
    %v334 = vmul.f32 %v331, %v333
    %v335 = vadd.f32 %v331, %v334
    %vm336 = vweird.f32 %v327
    %vm337 = vweird.f32 %v331
    %vm338 = vmor %vm336, %vm337
    %v339 = vsel %vm338, %v331, %v335
    %v340 = vand.u32 2147483647, %v327
    %vm341 = vcmp.eq.f32.partialorder %v340, 8.507059e+37
    %v342 = vand.u32 %v327, 2147483648
    %v343 = vor.u32 1.1754944e-38, %v342
    %v344 = vsel %vm341, %v343, %v339
    %v345 = vmul.f32 %v322, %v344
    %v346 = vrcp.pop %v330
    %v347 = vmul.f32 %v330, %v346
    %v348 = vsub.f32 1.0, %v347
    %v349 = vmul.f32 %v346, %v348
    %v350 = vadd.f32 %v346, %v349
    %vm351 = vweird.f32 %v330
    %vm352 = vweird.f32 %v346
    %vm353 = vmor %vm351, %vm352
    %v354 = vsel %vm353, %v346, %v350
    %v355 = vand.u32 2147483647, %v330
    %vm356 = vcmp.eq.f32.partialorder %v355, 8.507059e+37
    %v357 = vand.u32 %v330, 2147483648
    %v358 = vor.u32 1.1754944e-38, %v357
    %v359 = vsel %vm356, %v358, %v354
    %v360 = vmul.f32 %v324, %v359
    %362 = vrot.lane.b32.xlu0 %v84, 112
    %v363 = vpop.permute.xlu0 %362
    %v366 = vsel %vm162, %v345, 0
    %368 = vmatpush.msra.mxu0 0.0
    %369 = vmatpush.msra.mxu0 0.0
    %370 = vmatpush.msra.mxu0 0.0
    %371 = vmatpush.msra.mxu0 0.0
    %372 = vmatpush.msra.mxu0 0.0
    %373 = vmatpush.msra.mxu0 0.0
    %374 = vmatpush.msra.mxu0 0.0
    %375 = vmatpush.msra.mxu0 0.0
    %376 = vmatpush.msra.mxu0 0.0
    %377 = vmatpush.msra.mxu0 0.0
    %378 = vmatpush.msra.mxu0 0.0
    %379 = vmatpush.msra.mxu0 0.0
    %380 = vmatpush.msra.mxu0 0.0
    %381 = vmatpush.msra.mxu0 0.0
    %382 = vmatpush.msra.mxu0 0.0
    %383 = vmatpush.msra.mxu0 %v363
    %384 = vmatmul.f32.gmra.mxu0 %v366
    %v385 = vpop.f32.mrf.mxu0
    %v386 = vadd.f32 0.0, %v385
    %387 = vdwg.mxu0
    %389 = vrot.lane.b32.xlu0 %v87, 112
    %v390 = vpop.permute.xlu0 %389
    %v393 = vsel %vm162, %v360, 0
    %395 = vmatpush.msra.mxu0 0.0
    %396 = vmatpush.msra.mxu0 0.0
    %397 = vmatpush.msra.mxu0 0.0
    %398 = vmatpush.msra.mxu0 0.0
    %399 = vmatpush.msra.mxu0 0.0
    %400 = vmatpush.msra.mxu0 0.0
    %401 = vmatpush.msra.mxu0 0.0
    %402 = vmatpush.msra.mxu0 0.0
    %403 = vmatpush.msra.mxu0 0.0
    %404 = vmatpush.msra.mxu0 0.0
    %405 = vmatpush.msra.mxu0 0.0
    %406 = vmatpush.msra.mxu0 0.0
    %407 = vmatpush.msra.mxu0 0.0
    %408 = vmatpush.msra.mxu0 0.0
    %409 = vmatpush.msra.mxu0 0.0
    %410 = vmatpush.msra.mxu0 %v390
    %411 = vmatmul.f32.gmra.mxu0 %v393
    %v412 = vpop.f32.mrf.mxu0
    %v413 = vadd.f32 0.0, %v412
    %414 = vdwg.mxu0
    %v416 = vsel %vm108, %v386, 0
    %v419 = vsel %vm108, %v413, 0
    %421 = vmatpush.msra.mxu0 0.0
    %422 = vmatpush.msra.mxu0 0.0
    %423 = vmatpush.msra.mxu0 0.0
    %424 = vmatpush.msra.mxu0 0.0
    %425 = vmatpush.msra.mxu0 0.0
    %426 = vmatpush.msra.mxu0 0.0
    %427 = vmatpush.msra.mxu0 0.0
    %428 = vmatpush.msra.mxu0 0.0
    %429 = vmatpush.msra.mxu0 0.0
    %430 = vmatpush.msra.mxu0 0.0
    %431 = vmatpush.msra.mxu0 0.0
    %432 = vmatpush.msra.mxu0 0.0
    %433 = vmatpush.msra.mxu0 0.0
    %434 = vmatpush.msra.mxu0 0.0
    %435 = vmatpush.msra.mxu0 %v98
    %436 = vmatpush.msra.mxu0 %v97
    %437 = vmatmul.f32.gmra.mxu0 %v416
    %v438 = vpop.f32.mrf.mxu0
    %v439 = vadd.f32 0.0, %v438
    %440 = vmatmul.f32.gmra.mxu0 %v419
    %v441 = vpop.f32.mrf.mxu0
    %v442 = vadd.f32 0.0, %v441
    %443 = vdwg.mxu0
    %v445 = vsel %vm108, %v232, 0
    %v448 = vsel %vm108, %v255, 0
    %450 = vmatpush.msra.mxu0 0.0
    %451 = vmatpush.msra.mxu0 0.0
    %452 = vmatpush.msra.mxu0 0.0
    %453 = vmatpush.msra.mxu0 0.0
    %454 = vmatpush.msra.mxu0 0.0
    %455 = vmatpush.msra.mxu0 0.0
    %456 = vmatpush.msra.mxu0 0.0
    %457 = vmatpush.msra.mxu0 0.0
    %458 = vmatpush.msra.mxu0 0.0
    %459 = vmatpush.msra.mxu0 0.0
    %460 = vmatpush.msra.mxu0 0.0
    %461 = vmatpush.msra.mxu0 0.0
    %462 = vmatpush.msra.mxu0 0.0
    %463 = vmatpush.msra.mxu0 0.0
    %464 = vmatpush.msra.mxu0 %v96
    %465 = vmatpush.msra.mxu0 %v95
    %466 = vmatmul.f32.gmra.mxu0 %v445
    %v467 = vpop.f32.mrf.mxu0
    %v468 = vadd.f32 %v439, %v467
    %469 = vmatmul.f32.gmra.mxu0 %v448
    %v470 = vpop.f32.mrf.mxu0
    %v471 = vadd.f32 %v442, %v470
    %472 = vdwg.mxu0
    %473 = vrot.lane.b32.xlu0 %v103, 96
    %v474 = vpop.permute.xlu0 %473
    %475 = vrot.lane.b32.xlu0 %v61, 32
    %v476 = vpop.permute.xlu0 %475
    %v477 = vsel %vm108, %v474, 0
    %v479 = vsel %vm108, %v476, 0
    %481 = vmatpush.xpose.msra.mxu0 0.0
    %482 = vmatpush.xpose.msra.mxu0 0.0
    %483 = vmatpush.xpose.msra.mxu0 0.0
    %484 = vmatpush.xpose.msra.mxu0 0.0
    %485 = vmatpush.xpose.msra.mxu0 0.0
    %486 = vmatpush.xpose.msra.mxu0 0.0
    %487 = vmatpush.xpose.msra.mxu0 0.0
    %488 = vmatpush.xpose.msra.mxu0 0.0
    %489 = vmatpush.xpose.msra.mxu0 0.0
    %490 = vmatpush.xpose.msra.mxu0 0.0
    %491 = vmatpush.xpose.msra.mxu0 0.0
    %492 = vmatpush.xpose.msra.mxu0 0.0
    %493 = vmatpush.xpose.msra.mxu0 0.0
    %494 = vmatpush.xpose.msra.mxu0 0.0
    %495 = vmatpush.xpose.msra.mxu0 0.0
    %496 = vmatpush.xpose.msra.mxu0 %v479
    %497 = vmatmul.f32.gmra.mxu0 %v477
    %v498 = vpop.f32.mrf.mxu0
    %v499 = vadd.f32 %v94, %v498
    %500 = vdwg.mxu0
    %501 = vrot.lane.b32.xlu0 %v104, 96
    %v502 = vpop.permute.xlu0 %501
    %503 = vrot.lane.b32.xlu0 %v64, 32
    %v504 = vpop.permute.xlu0 %503
    %v505 = vsel %vm108, %v502, 0
    %v507 = vsel %vm108, %v504, 0
    %509 = vmatpush.xpose.msra.mxu0 0.0
    %510 = vmatpush.xpose.msra.mxu0 0.0
    %511 = vmatpush.xpose.msra.mxu0 0.0
    %512 = vmatpush.xpose.msra.mxu0 0.0
    %513 = vmatpush.xpose.msra.mxu0 0.0
    %514 = vmatpush.xpose.msra.mxu0 0.0
    %515 = vmatpush.xpose.msra.mxu0 0.0
    %516 = vmatpush.xpose.msra.mxu0 0.0
    %517 = vmatpush.xpose.msra.mxu0 0.0
    %518 = vmatpush.xpose.msra.mxu0 0.0
    %519 = vmatpush.xpose.msra.mxu0 0.0
    %520 = vmatpush.xpose.msra.mxu0 0.0
    %521 = vmatpush.xpose.msra.mxu0 0.0
    %522 = vmatpush.xpose.msra.mxu0 0.0
    %523 = vmatpush.xpose.msra.mxu0 0.0
    %524 = vmatpush.xpose.msra.mxu0 %v507
    %525 = vmatmul.f32.gmra.mxu0 %v505
    %v526 = vpop.f32.mrf.mxu0
    %v527 = vadd.f32 %v94, %v526
    %528 = vdwg.mxu0
    %v529 = vsel %vm162, %v499, -inf
    %530 = vmax.xlane.f32.xlu0 %v529
    %v531 = vpop.xlane.xlu0 %530
    %v532 = vsel %vm162, %v527, -inf
    %533 = vmax.xlane.f32.xlu0 %v532
    %v534 = vpop.xlane.xlu0 %533
    %v535 = vsub.f32 %v499, %v531
    %v536 = vsub.f32 %v527, %v534
    %v537 = vmul.f32 %v535, 1.442695
    %v538 = vpow.pop %v537
    %v539 = vmul.f32 %v536, 1.442695
    %v540 = vpow.pop %v539
    %v541 = vsel %vm162, %v538, 0.0
    %542 = vadd.xlane.f32.xlu0 %v541
    %v543 = vpop.xlane.xlu0 %542
    %v544 = vsel %vm162, %v540, 0.0
    %545 = vadd.xlane.f32.xlu0 %v544
    %v546 = vpop.xlane.xlu0 %545
    %v547 = vrcp.pop %v543
    %v548 = vmul.f32 %v543, %v547
    %v549 = vsub.f32 1.0, %v548
    %v550 = vmul.f32 %v547, %v549
    %v551 = vadd.f32 %v547, %v550
    %vm552 = vweird.f32 %v543
    %vm553 = vweird.f32 %v547
    %vm554 = vmor %vm552, %vm553
    %v555 = vsel %vm554, %v547, %v551
    %v556 = vand.u32 2147483647, %v543
    %vm557 = vcmp.eq.f32.partialorder %v556, 8.507059e+37
    %v558 = vand.u32 %v543, 2147483648
    %v559 = vor.u32 1.1754944e-38, %v558
    %v560 = vsel %vm557, %v559, %v555
    %v561 = vmul.f32 %v538, %v560
    %v562 = vrcp.pop %v546
    %v563 = vmul.f32 %v546, %v562
    %v564 = vsub.f32 1.0, %v563
    %v565 = vmul.f32 %v562, %v564
    %v566 = vadd.f32 %v562, %v565
    %vm567 = vweird.f32 %v546
    %vm568 = vweird.f32 %v562
    %vm569 = vmor %vm567, %vm568
    %v570 = vsel %vm569, %v562, %v566
    %v571 = vand.u32 2147483647, %v546
    %vm572 = vcmp.eq.f32.partialorder %v571, 8.507059e+37
    %v573 = vand.u32 %v546, 2147483648
    %v574 = vor.u32 1.1754944e-38, %v573
    %v575 = vsel %vm572, %v574, %v570
    %v576 = vmul.f32 %v540, %v575
    %577 = vrot.lane.b32.xlu0 %v84, 96
    %v578 = vpop.permute.xlu0 %577
    %v581 = vsel %vm162, %v561, 0
    %583 = vmatpush.msra.mxu0 0.0
    %584 = vmatpush.msra.mxu0 0.0
    %585 = vmatpush.msra.mxu0 0.0
    %586 = vmatpush.msra.mxu0 0.0
    %587 = vmatpush.msra.mxu0 0.0
    %588 = vmatpush.msra.mxu0 0.0
    %589 = vmatpush.msra.mxu0 0.0
    %590 = vmatpush.msra.mxu0 0.0
    %591 = vmatpush.msra.mxu0 0.0
    %592 = vmatpush.msra.mxu0 0.0
    %593 = vmatpush.msra.mxu0 0.0
    %594 = vmatpush.msra.mxu0 0.0
    %595 = vmatpush.msra.mxu0 0.0
    %596 = vmatpush.msra.mxu0 0.0
    %597 = vmatpush.msra.mxu0 0.0
    %598 = vmatpush.msra.mxu0 %v578
    %599 = vmatmul.f32.gmra.mxu0 %v581
    %v600 = vpop.f32.mrf.mxu0
    %v601 = vadd.f32 0.0, %v600
    %602 = vdwg.mxu0
    %603 = vrot.lane.b32.xlu0 %v87, 96
    %v604 = vpop.permute.xlu0 %603
    %v607 = vsel %vm162, %v576, 0
    %609 = vmatpush.msra.mxu0 0.0
    %610 = vmatpush.msra.mxu0 0.0
    %611 = vmatpush.msra.mxu0 0.0
    %612 = vmatpush.msra.mxu0 0.0
    %613 = vmatpush.msra.mxu0 0.0
    %614 = vmatpush.msra.mxu0 0.0
    %615 = vmatpush.msra.mxu0 0.0
    %616 = vmatpush.msra.mxu0 0.0
    %617 = vmatpush.msra.mxu0 0.0
    %618 = vmatpush.msra.mxu0 0.0
    %619 = vmatpush.msra.mxu0 0.0
    %620 = vmatpush.msra.mxu0 0.0
    %621 = vmatpush.msra.mxu0 0.0
    %622 = vmatpush.msra.mxu0 0.0
    %623 = vmatpush.msra.mxu0 0.0
    %624 = vmatpush.msra.mxu0 %v604
    %625 = vmatmul.f32.gmra.mxu0 %v607
    %v626 = vpop.f32.mrf.mxu0
    %v627 = vadd.f32 0.0, %v626
    %628 = vdwg.mxu0
    %v630 = vsel %vm108, %v601, 0
    %v633 = vsel %vm108, %v627, 0
    %635 = vmatpush.msra.mxu0 0.0
    %636 = vmatpush.msra.mxu0 0.0
    %637 = vmatpush.msra.mxu0 0.0
    %638 = vmatpush.msra.mxu0 0.0
    %639 = vmatpush.msra.mxu0 0.0
    %640 = vmatpush.msra.mxu0 0.0
    %641 = vmatpush.msra.mxu0 0.0
    %642 = vmatpush.msra.mxu0 0.0
    %643 = vmatpush.msra.mxu0 0.0
    %644 = vmatpush.msra.mxu0 0.0
    %645 = vmatpush.msra.mxu0 0.0
    %646 = vmatpush.msra.mxu0 0.0
    %647 = vmatpush.msra.mxu0 0.0
    %648 = vmatpush.msra.mxu0 0.0
    %649 = vmatpush.msra.mxu0 %v100
    %650 = vmatpush.msra.mxu0 %v99
    %651 = vmatmul.f32.gmra.mxu0 %v630
    %v652 = vpop.f32.mrf.mxu0
    %v653 = vadd.f32 0.0, %v652
    %654 = vmatmul.f32.gmra.mxu0 %v633
    %v655 = vpop.f32.mrf.mxu0
    %v656 = vadd.f32 0.0, %v655
    %657 = vdwg.mxu0
    %v658 = vadd.f32 %v468, %v653
    %v659 = vadd.f32 %v471, %v656
    %660 = vrot.lane.b32.xlu0 %v103, 80
    %v661 = vpop.permute.xlu0 %660
    %662 = vrot.lane.b32.xlu0 %v61, 16
    %v663 = vpop.permute.xlu0 %662
    %v664 = vsel %vm108, %v661, 0
    %v666 = vsel %vm108, %v663, 0
    %668 = vmatpush.xpose.msra.mxu0 0.0
    %669 = vmatpush.xpose.msra.mxu0 0.0
    %670 = vmatpush.xpose.msra.mxu0 0.0
    %671 = vmatpush.xpose.msra.mxu0 0.0
    %672 = vmatpush.xpose.msra.mxu0 0.0
    %673 = vmatpush.xpose.msra.mxu0 0.0
    %674 = vmatpush.xpose.msra.mxu0 0.0
    %675 = vmatpush.xpose.msra.mxu0 0.0
    %676 = vmatpush.xpose.msra.mxu0 0.0
    %677 = vmatpush.xpose.msra.mxu0 0.0
    %678 = vmatpush.xpose.msra.mxu0 0.0
    %679 = vmatpush.xpose.msra.mxu0 0.0
    %680 = vmatpush.xpose.msra.mxu0 0.0
    %681 = vmatpush.xpose.msra.mxu0 0.0
    %682 = vmatpush.xpose.msra.mxu0 0.0
    %683 = vmatpush.xpose.msra.mxu0 %v666
    %684 = vmatmul.f32.gmra.mxu0 %v664
    %v685 = vpop.f32.mrf.mxu0
    %v686 = vadd.f32 %v94, %v685
    %687 = vdwg.mxu0
    %688 = vrot.lane.b32.xlu0 %v104, 80
    %v689 = vpop.permute.xlu0 %688
    %690 = vrot.lane.b32.xlu0 %v64, 16
    %v691 = vpop.permute.xlu0 %690
    %v692 = vsel %vm108, %v689, 0
    %v694 = vsel %vm108, %v691, 0
    %696 = vmatpush.xpose.msra.mxu0 0.0
    %697 = vmatpush.xpose.msra.mxu0 0.0
    %698 = vmatpush.xpose.msra.mxu0 0.0
    %699 = vmatpush.xpose.msra.mxu0 0.0
    %700 = vmatpush.xpose.msra.mxu0 0.0
    %701 = vmatpush.xpose.msra.mxu0 0.0
    %702 = vmatpush.xpose.msra.mxu0 0.0
    %703 = vmatpush.xpose.msra.mxu0 0.0
    %704 = vmatpush.xpose.msra.mxu0 0.0
    %705 = vmatpush.xpose.msra.mxu0 0.0
    %706 = vmatpush.xpose.msra.mxu0 0.0
    %707 = vmatpush.xpose.msra.mxu0 0.0
    %708 = vmatpush.xpose.msra.mxu0 0.0
    %709 = vmatpush.xpose.msra.mxu0 0.0
    %710 = vmatpush.xpose.msra.mxu0 0.0
    %711 = vmatpush.xpose.msra.mxu0 %v694
    %712 = vmatmul.f32.gmra.mxu0 %v692
    %v713 = vpop.f32.mrf.mxu0
    %v714 = vadd.f32 %v94, %v713
    %715 = vdwg.mxu0
    %v716 = vsel %vm162, %v686, -inf
    %717 = vmax.xlane.f32.xlu0 %v716
    %v718 = vpop.xlane.xlu0 %717
    %v719 = vsel %vm162, %v714, -inf
    %720 = vmax.xlane.f32.xlu0 %v719
    %v721 = vpop.xlane.xlu0 %720
    %v722 = vsub.f32 %v686, %v718
    %v723 = vsub.f32 %v714, %v721
    %v724 = vmul.f32 %v722, 1.442695
    %v725 = vpow.pop %v724
    %v726 = vmul.f32 %v723, 1.442695
    %v727 = vpow.pop %v726
    %v728 = vsel %vm162, %v725, 0.0
    %729 = vadd.xlane.f32.xlu0 %v728
    %v730 = vpop.xlane.xlu0 %729
    %v731 = vsel %vm162, %v727, 0.0
    %732 = vadd.xlane.f32.xlu0 %v731
    %v733 = vpop.xlane.xlu0 %732
    %v734 = vrcp.pop %v730
    %v735 = vmul.f32 %v730, %v734
    %v736 = vsub.f32 1.0, %v735
    %v737 = vmul.f32 %v734, %v736
    %v738 = vadd.f32 %v734, %v737
    %vm739 = vweird.f32 %v730
    %vm740 = vweird.f32 %v734
    %vm741 = vmor %vm739, %vm740
    %v742 = vsel %vm741, %v734, %v738
    %v743 = vand.u32 2147483647, %v730
    %vm744 = vcmp.eq.f32.partialorder %v743, 8.507059e+37
    %v745 = vand.u32 %v730, 2147483648
    %v746 = vor.u32 1.1754944e-38, %v745
    %v747 = vsel %vm744, %v746, %v742
    %v748 = vmul.f32 %v725, %v747
    %v749 = vrcp.pop %v733
    %v750 = vmul.f32 %v733, %v749
    %v751 = vsub.f32 1.0, %v750
    %v752 = vmul.f32 %v749, %v751
    %v753 = vadd.f32 %v749, %v752
    %vm754 = vweird.f32 %v733
    %vm755 = vweird.f32 %v749
    %vm756 = vmor %vm754, %vm755
    %v757 = vsel %vm756, %v749, %v753
    %v758 = vand.u32 2147483647, %v733
    %vm759 = vcmp.eq.f32.partialorder %v758, 8.507059e+37
    %v760 = vand.u32 %v733, 2147483648
    %v761 = vor.u32 1.1754944e-38, %v760
    %v762 = vsel %vm759, %v761, %v757
    %v763 = vmul.f32 %v727, %v762
    %764 = vrot.lane.b32.xlu0 %v84, 80
    %v765 = vpop.permute.xlu0 %764
    %v768 = vsel %vm162, %v748, 0
    %770 = vmatpush.msra.mxu0 0.0
    %771 = vmatpush.msra.mxu0 0.0
    %772 = vmatpush.msra.mxu0 0.0
    %773 = vmatpush.msra.mxu0 0.0
    %774 = vmatpush.msra.mxu0 0.0
    %775 = vmatpush.msra.mxu0 0.0
    %776 = vmatpush.msra.mxu0 0.0
    %777 = vmatpush.msra.mxu0 0.0
    %778 = vmatpush.msra.mxu0 0.0
    %779 = vmatpush.msra.mxu0 0.0
    %780 = vmatpush.msra.mxu0 0.0
    %781 = vmatpush.msra.mxu0 0.0
    %782 = vmatpush.msra.mxu0 0.0
    %783 = vmatpush.msra.mxu0 0.0
    %784 = vmatpush.msra.mxu0 0.0
    %785 = vmatpush.msra.mxu0 %v765
    %786 = vmatmul.f32.gmra.mxu0 %v768
    %v787 = vpop.f32.mrf.mxu0
    %v788 = vadd.f32 0.0, %v787
    %789 = vdwg.mxu0
    %790 = vrot.lane.b32.xlu0 %v87, 80
    %v791 = vpop.permute.xlu0 %790
    %v794 = vsel %vm162, %v763, 0
    %796 = vmatpush.msra.mxu0 0.0
    %797 = vmatpush.msra.mxu0 0.0
    %798 = vmatpush.msra.mxu0 0.0
    %799 = vmatpush.msra.mxu0 0.0
    %800 = vmatpush.msra.mxu0 0.0
    %801 = vmatpush.msra.mxu0 0.0
    %802 = vmatpush.msra.mxu0 0.0
    %803 = vmatpush.msra.mxu0 0.0
    %804 = vmatpush.msra.mxu0 0.0
    %805 = vmatpush.msra.mxu0 0.0
    %806 = vmatpush.msra.mxu0 0.0
    %807 = vmatpush.msra.mxu0 0.0
    %808 = vmatpush.msra.mxu0 0.0
    %809 = vmatpush.msra.mxu0 0.0
    %810 = vmatpush.msra.mxu0 0.0
    %811 = vmatpush.msra.mxu0 %v791
    %812 = vmatmul.f32.gmra.mxu0 %v794
    %v813 = vpop.f32.mrf.mxu0
    %v814 = vadd.f32 0.0, %v813
    %815 = vdwg.mxu0
    %v817 = vsel %vm108, %v788, 0
    %v820 = vsel %vm108, %v814, 0
    %822 = vmatpush.msra.mxu0 0.0
    %823 = vmatpush.msra.mxu0 0.0
    %824 = vmatpush.msra.mxu0 0.0
    %825 = vmatpush.msra.mxu0 0.0
    %826 = vmatpush.msra.mxu0 0.0
    %827 = vmatpush.msra.mxu0 0.0
    %828 = vmatpush.msra.mxu0 0.0
    %829 = vmatpush.msra.mxu0 0.0
    %830 = vmatpush.msra.mxu0 0.0
    %831 = vmatpush.msra.mxu0 0.0
    %832 = vmatpush.msra.mxu0 0.0
    %833 = vmatpush.msra.mxu0 0.0
    %834 = vmatpush.msra.mxu0 0.0
    %835 = vmatpush.msra.mxu0 0.0
    %836 = vmatpush.msra.mxu0 %v102
    %837 = vmatpush.msra.mxu0 %v101
    %838 = vmatmul.f32.gmra.mxu0 %v817
    %v839 = vpop.f32.mrf.mxu0
    %v840 = vadd.f32 0.0, %v839
    %841 = vmatmul.f32.gmra.mxu0 %v820
    %v842 = vpop.f32.mrf.mxu0
    %v843 = vadd.f32 0.0, %v842
    %844 = vdwg.mxu0
    %v845 = vadd.f32 %v658, %v840
    %v846 = vadd.f32 %v659, %v843
    %v847 = vld [vmem:[%s3] sm:$0x1]
    %v849 = vperm.slane %v847, 0
    %v851 = vadd.f32 %v845, %v849
    %v852 = vadd.f32 %v846, %v849
    %853 = vst.msk [vmem:[#allocation2] sm:$0xff] %vm36, %v851
    %854 = vst.msk [vmem:[#allocation2 + $0x8] sm:$0xff] %vm36, %v852
    // Predicated region
    $region18: #{multi_head_attention.1} parent=1 // pred_check
      _
    $region19: #{multi_head_attention.1} parent=1 // pred_check_branch
      %856 = sbr.rel (0) target = $region21
    $region20: #{multi_head_attention.1} parent=1 // pred_region
      %858 = vsyncadd [#allocation3], 0
      %s859 = sshll.u32 [#allocation2], 4
      %s860 = int_to_ptr.vmem [resolvable:$true] %s859
      %s861 = sshll.u32 %s4, 4
      %s862 = int_to_ptr.hbm [resolvable:$true] %s861
      %867 = dma.vmem_to_hbm [thread:$0]  %s860, 256, %s862, [#allocation3], 128, 128, 8
    $region21: #{multi_head_attention.1} parent=1 // pred_fallthru
      _
    // Predicated region
    $region22: #{multi_head_attention.1} parent=1 // pred_check
      _
    $region23: #{multi_head_attention.1} parent=1 // pred_check_branch
      %869 = sbr.rel (0) target = $region25
    $region24: #{multi_head_attention.1} parent=1 // pred_region
      %871 = dma.done [#allocation3], 256
    $region25: #{multi_head_attention.1} parent=1 // pred_fallthru
      _
    %872 = vsyncpa [#allocation3], 1

</llo_original>
